<compile_context>
chip_gen: v7x
topology: tpu7x:2x2x1
jax: 0.10.0
libtpu: 0.0.40
codegen_flags: <defaults>
</compile_context>

<pallas_src>
import functools

import jax
import jax.numpy as jnp
from jax.experimental import pallas as pl
from jax.experimental.pallas import tpu as pltpu

_LANE = 128
_SUBLANE = 8


def _round_up(x, m):
    return ((x + m - 1) // m) * m


def _lstm_step_kernel(xh_ref, c_ref, w_ref, b_ref, hc_out_ref):
    """Fused single-step LSTM cell.

    xh_ref : [Bp, F+H]            concatenated input+hidden (batch padded)
    c_ref  : [Bp, Hp]             cell state, f32, gate-padded to Hp lanes
    w_ref  : [F+H, 4*Hp]          stacked, gate-lane-aligned weights
    b_ref  : [1, 4*Hp]            pre-summed bias (b_ih + b_hh), f32
    hc_out : [Bp, 2*Hp]           output slab: [h_new | c_new], f32
    """
    hp = c_ref.shape[-1]

    # Single MXU push: [Bp, F+H] x [F+H, 4Hp] -> [Bp, 4Hp], f32 accumulation.
    gates = (
        jnp.dot(xh_ref[...].astype(w_ref.dtype), w_ref[...],
                preferred_element_type=jnp.float32)
        + b_ref[...]
    )

    # Lane-aligned gate slices (offsets are multiples of Hp, Hp % 128 == 0).
    i_g = jax.nn.sigmoid(gates[:, 0 * hp:1 * hp])
    f_g = jax.nn.sigmoid(gates[:, 1 * hp:2 * hp])
    g_g = jnp.tanh(gates[:, 2 * hp:3 * hp])
    o_g = jax.nn.sigmoid(gates[:, 3 * hp:4 * hp])

    c_new = f_g * c_ref[...] + i_g * g_g          # f32 end-to-end
    h_new = o_g * jnp.tanh(c_new)

    # Lane-dense, lane-aligned stores into one output slab.
    hc_out_ref[:, :hp] = h_new
    hc_out_ref[:, hp:] = c_new


def prepare_decoder_params(w_ih, w_hh, b_ih, b_hh, compute_dtype=jnp.float32):
    """One-time weight prep (hoisted out of the per-step path).

    w_ih: [4H, F], w_hh: [4H, H], b_ih/b_hh: [4H]  (PyTorch LSTM layout).
    Returns:
      w_packed: [F+H, 4*Hp]  stacked [W_ih^T ; W_hh^T], each gate's H columns
                             placed in its own lane-aligned Hp-wide slot.
      b_packed: [1, 4*Hp]    (b_ih + b_hh), f32, same gate layout.
    On v6e/v7x pass compute_dtype=jnp.bfloat16 to halve weight bandwidth
    (accumulation stays f32 via preferred_element_type).
    """
    four_h, in_feats = w_ih.shape
    hidden = four_h // 4
    hp = _round_up(hidden, _LANE)
    k = in_feats + hidden

    w = jnp.concatenate([jnp.transpose(w_ih), jnp.transpose(w_hh)], axis=0)  # [K, 4H]
    w4 = w.reshape(k, 4, hidden).astype(compute_dtype)
    w_packed = jnp.zeros((k, 4, hp), compute_dtype).at[:, :, :hidden].set(w4)
    w_packed = w_packed.reshape(k, 4 * hp)

    b = (b_ih + b_hh).astype(jnp.float32).reshape(4, hidden)
    b_packed = jnp.zeros((1, 4, hp), jnp.float32).at[0, :, :hidden].set(b)
    b_packed = b_packed.reshape(1, 4 * hp)
    return w_packed, b_packed


@jax.jit
def decoder_forward(inp, h0, c0, w_packed, b_packed):
    """Mirrors Decoder.forward with pre-packed weights.

    inp : [B, 1, F]   (seq_len must be 1, as documented by the PyTorch module)
    h0  : [1, B, H]
    c0  : [1, B, H]
    w_packed / b_packed: outputs of prepare_decoder_params.

    Returns (decoder_output [B, 1, H], (h_n [1, B, H], c_n [1, B, H]))
    """
    batch, seq_len, in_feats = inp.shape
    assert seq_len == 1, "Decoder forward is defined for seq_len == 1"
    hidden = h0.shape[-1]
    hp = w_packed.shape[-1] // 4
    k = in_feats + hidden
    bp = _round_up(batch, _SUBLANE)

    # Fused activation operand: [x | h] along the contraction axis.
    xh = jnp.concatenate([inp[:, 0, :], h0[0].astype(inp.dtype)], axis=-1)  # [B, K]
    if bp != batch:
        xh = jnp.pad(xh, ((0, bp - batch), (0, 0)))

    c2d = c0[0].astype(jnp.float32)                                          # [B, H]
    if bp != batch or hp != hidden:
        c2d = jnp.pad(c2d, ((0, bp - batch), (0, hp - hidden)))

    vmem = pl.BlockSpec(memory_space=pltpu.MemorySpace.VMEM)

    bytes_accessed = int(
        bp * k * xh.dtype.itemsize
        + bp * hp * 4
        + w_packed.size * w_packed.dtype.itemsize
        + b_packed.size * 4
        + bp * 2 * hp * 4
    )
    cost = pl.CostEstimate(
        flops=2 * bp * k * 4 * hp,
        transcendentals=5 * bp * hp,          # 3 sigmoid + 2 tanh per state elem
        bytes_accessed=bytes_accessed,
    )
    vmem_limit = int(min(96 * 1024 * 1024, max(4 * 1024 * 1024, 4 * bytes_accessed)))

    hc = pl.pallas_call(
        _lstm_step_kernel,
        out_shape=jax.ShapeDtypeStruct((bp, 2 * hp), jnp.float32),
        in_specs=[vmem, vmem, vmem, vmem],
        out_specs=vmem,
        compiler_params=pltpu.CompilerParams(vmem_limit_bytes=vmem_limit),
        cost_estimate=cost,
    )(xh, c2d, w_packed, b_packed)

    h_new = hc[:batch, :hidden].astype(inp.dtype)
    c_new = hc[:batch, hp:hp + hidden].astype(c0.dtype)

    decoder_output = h_new[:, None, :]      # [B, 1, H]
    h_n = h_new[None, :, :]                 # [1, B, H]
    c_n = c_new[None, :, :]                 # [1, B, H]
    return decoder_output, (h_n, c_n)


def _reference_forward(inp, h0, c0, w_ih, w_hh, b_ih, b_hh):
    """Plain-JAX reference of a single PyTorch LSTM step (for sanity check)."""
    x = inp[:, 0, :]
    h = h0[0]
    c = c0[0]
    gates = x @ w_ih.T + b_ih + h @ w_hh.T + b_hh
    hidden = h.shape[-1]
    i = jax.nn.sigmoid(gates[:, 0 * hidden:1 * hidden])
    f = jax.nn.sigmoid(gates[:, 1 * hidden:2 * hidden])
    g = jnp.tanh(gates[:, 2 * hidden:3 * hidden])
    o = jax.nn.sigmoid(gates[:, 3 * hidden:4 * hidden])
    c_new = f * c + i * g
    h_new = o * jnp.tanh(c_new)
    return h_new[:, None, :], (h_new[None], c_new[None])


if __name__ == "__main__":
    batch = 2
    in_feats = 8
    hidden = 32   # 4H = 128; padded internally to one 128-lane slot per gate

    key = jax.random.PRNGKey(0)
    k_x, k_h, k_c, k_wih, k_whh, k_bih, k_bhh = jax.random.split(key, 7)

    # Deterministic parameter init mimicking PyTorch's U(-1/sqrt(H), 1/sqrt(H)).
    bound = 1.0 / jnp.sqrt(jnp.float32(hidden))
    w_ih = jax.random.uniform(k_wih, (4 * hidden, in_feats), jnp.float32, -bound, bound)
    w_hh = jax.random.uniform(k_whh, (4 * hidden, hidden), jnp.float32, -bound, bound)
    b_ih = jax.random.uniform(k_bih, (4 * hidden,), jnp.float32, -bound, bound)
    b_hh = jax.random.uniform(k_bhh, (4 * hidden,), jnp.float32, -bound, bound)

    x = jax.random.normal(k_x, (batch, 1, in_feats), jnp.float32)
    h0 = jax.random.normal(k_h, (1, batch, hidden), jnp.float32)
    c0 = jax.random.normal(k_c, (1, batch, hidden), jnp.float32)

    # One-time weight packing (hoisted out of the per-step path).
    w_packed, b_packed = prepare_decoder_params(w_ih, w_hh, b_ih, b_hh)
    w_packed, b_packed = jax.block_until_ready((w_packed, b_packed))

    out, (h_n, c_n) = decoder_forward(x, h0, c0, w_packed, b_packed)
    jax.block_until_ready((out, h_n, c_n))

    # Sanity check against a pure-JAX reference of the LSTM cell.
    ref_out, (ref_h, ref_c) = _reference_forward(x, h0, c0, w_ih, w_hh, b_ih, b_hh)
    assert out.shape == (batch, 1, hidden)
    assert h_n.shape == (1, batch, hidden) and c_n.shape == (1, batch, hidden)
    assert jnp.allclose(out, ref_out, atol=1e-5)
    assert jnp.allclose(h_n, ref_h, atol=1e-5)
    assert jnp.allclose(c_n, ref_c, atol=1e-5)

    print("KERNEL_OK")
</pallas_src>

<mosaic_0001>
module attributes {stable_mosaic.version = 11 : i64} {
  func.func @_lstm_step_kernel(%arg0: memref<8x40xf32, #tpu.memory_space<vmem>>, %arg1: memref<8x128xf32, #tpu.memory_space<vmem>>, %arg2: memref<40x512xf32, #tpu.memory_space<vmem>>, %arg3: memref<1x512xf32, #tpu.memory_space<vmem>>, %arg4: memref<8x256xf32, #tpu.memory_space<vmem>>) attributes {dimension_semantics = [], scalar_prefetch = 0 : i64, scratch_operands = 0 : i64, tpu.core_type = #tpu.core_type<tc>} {
    %c0 = arith.constant 0 : index
    %c0_0 = arith.constant 0 : index
    %0 = vector.load %arg0[%c0, %c0_0] : memref<8x40xf32, #tpu.memory_space<vmem>>, vector<8x40xf32>
    %c0_1 = arith.constant 0 : index
    %c0_2 = arith.constant 0 : index
    %1 = vector.load %arg2[%c0_1, %c0_2] : memref<40x512xf32, #tpu.memory_space<vmem>>, vector<40x512xf32>
    %cst = arith.constant dense<0.000000e+00> : vector<8x512xf32>
    %2 = tpu.matmul %0, %1, %cst {dimension_numbers = #tpu.dot_dimension_numbers<[1], [0], [0], [1], [0, 0, 1, 1], [], []>} : vector<8x40xf32>, vector<40x512xf32>, vector<8x512xf32> -> vector<8x512xf32>
    %c0_3 = arith.constant 0 : index
    %c0_4 = arith.constant 0 : index
    %3 = vector.load %arg3[%c0_3, %c0_4] : memref<1x512xf32, #tpu.memory_space<vmem>>, vector<1x512xf32>
    %4 = vector.broadcast %3 : vector<1x512xf32> to vector<8x512xf32>
    %5 = arith.addf %2, %4 : vector<8x512xf32>
    %6 = vector.extract_strided_slice %5 {offsets = [0, 0], sizes = [8, 128], strides = [1, 1]} : vector<8x512xf32> to vector<8x128xf32>
    %7 = arith.negf %6 : vector<8x128xf32>
    %8 = math.exp %7 : vector<8x128xf32>
    %cst_5 = arith.constant 1.000000e+00 : f32
    %9 = vector.broadcast %cst_5 : f32 to vector<8x128xf32>
    %10 = arith.addf %9, %8 : vector<8x128xf32>
    %11 = arith.divf %9, %10 : vector<8x128xf32>
    %12 = vector.extract_strided_slice %5 {offsets = [0, 128], sizes = [8, 128], strides = [1, 1]} : vector<8x512xf32> to vector<8x128xf32>
    %13 = arith.negf %12 : vector<8x128xf32>
    %14 = math.exp %13 : vector<8x128xf32>
    %cst_6 = arith.constant 1.000000e+00 : f32
    %15 = vector.broadcast %cst_6 : f32 to vector<8x128xf32>
    %16 = arith.addf %15, %14 : vector<8x128xf32>
    %17 = arith.divf %15, %16 : vector<8x128xf32>
    %18 = vector.extract_strided_slice %5 {offsets = [0, 256], sizes = [8, 128], strides = [1, 1]} : vector<8x512xf32> to vector<8x128xf32>
    %19 = math.tanh %18 : vector<8x128xf32>
    %20 = vector.extract_strided_slice %5 {offsets = [0, 384], sizes = [8, 128], strides = [1, 1]} : vector<8x512xf32> to vector<8x128xf32>
    %21 = arith.negf %20 : vector<8x128xf32>
    %22 = math.exp %21 : vector<8x128xf32>
    %cst_7 = arith.constant 1.000000e+00 : f32
    %23 = vector.broadcast %cst_7 : f32 to vector<8x128xf32>
    %24 = arith.addf %23, %22 : vector<8x128xf32>
    %25 = arith.divf %23, %24 : vector<8x128xf32>
    %c0_8 = arith.constant 0 : index
    %c0_9 = arith.constant 0 : index
    %26 = vector.load %arg1[%c0_8, %c0_9] : memref<8x128xf32, #tpu.memory_space<vmem>>, vector<8x128xf32>
    %27 = arith.mulf %17, %26 : vector<8x128xf32>
    %28 = arith.mulf %11, %19 : vector<8x128xf32>
    %29 = arith.addf %27, %28 : vector<8x128xf32>
    %30 = math.tanh %29 : vector<8x128xf32>
    %31 = arith.mulf %25, %30 : vector<8x128xf32>
    %c0_10 = arith.constant 0 : index
    %c0_11 = arith.constant 0 : index
    %32 = vector.load %arg4[%c0_10, %c0_11] : memref<8x256xf32, #tpu.memory_space<vmem>>, vector<8x128xf32>
    tpu.vector_store %arg4[%c0_10, %c0_11], %31 {strides = array<i32>} : memref<8x256xf32, #tpu.memory_space<vmem>>, vector<8x128xf32>,
    %c0_12 = arith.constant 0 : index
    %c128 = arith.constant 128 : index
    %33 = vector.load %arg4[%c0_12, %c128] : memref<8x256xf32, #tpu.memory_space<vmem>>, vector<8x128xf32>
    tpu.vector_store %arg4[%c0_12, %c128], %29 {strides = array<i32>} : memref<8x256xf32, #tpu.memory_space<vmem>>, vector<8x128xf32>,
    return
  }
}

</mosaic_0001>

<llo_original>
// kernel: decoder_forward.1
$region0: #{decoder_forward.1}
  #allocation0 [shape = 'u32[]', space=smem, size = 0x4, offset = 0x4, fixed_abs, tag = 'smem constant byte address 0x4 - core index']
  #allocation1 [shape = 'u32[144,128]{1,0:T(1,128)}', space=vmem, size = 0x12000, scoped, tag = 'internal scratch']
  %s0 = inlined_call_operand.vmem [shape: f32[8,40], index: 0, kind: input, shape index: {}]
  %s1 = inlined_call_operand.vmem [shape: f32[8,128], index: 1, kind: input, shape index: {}]
  %s2 = inlined_call_operand.hbm [shape: f32[40,512], index: 2, kind: input, shape index: {}]
  %s3 = inlined_call_operand.vmem [shape: f32[1,512], index: 3, kind: input, shape index: {}]
  %s4 = inlined_call_operand.vmem [shape: f32[8,256], index: 4, kind: output, shape index: {}]
  %s5 = sld [smem:[#allocation0]]
  $region30: #{decoder_forward.1} parent=0
    _
  %s7 = ssub.s32 1, %s5
  %s8 = scalar_select 0, %s7, %s5
  $region1: #{decoder_forward.1} parent=0
    #allocation2 [shape = 'u8[81920]{0}', space=vmem, size = 0x14000, scoped, tag = 'input window, operand 2, single buffered']
    #allocation3 [shape = 's32[1]{0}', space=sflag, size = 0x4, scoped, tag = 'scoped memory for decoder_forward.1']
    %9 = vsyncpa [#allocation3], 0
    // Predicated region
    $region2: #{decoder_forward.1} parent=1 // pred_check
      _
    $region3: #{decoder_forward.1} parent=1 // pred_check_branch
      %11 = sbr.rel (0) target = $region5
    $region4: #{decoder_forward.1} parent=1 // pred_region
      _
    $region5: #{decoder_forward.1} parent=1 // pred_fallthru
      _
    // Predicated region
    $region6: #{decoder_forward.1} parent=1 // pred_check
      _
    $region7: #{decoder_forward.1} parent=1 // pred_check_branch
      %13 = sbr.rel (0) target = $region9
    $region8: #{decoder_forward.1} parent=1 // pred_region
      _
    $region9: #{decoder_forward.1} parent=1 // pred_fallthru
      _
    // Predicated region
    $region10: #{decoder_forward.1} parent=1 // pred_check
      _
    $region11: #{decoder_forward.1} parent=1 // pred_check_branch
      %15 = sbr.rel (0) target = $region13
    $region12: #{decoder_forward.1} parent=1 // pred_region
      %s17 = ssub.s32 2560, 2560
      %18 = vsyncadd [#allocation3], %s17
      %s19 = sshll.u32 [#allocation2], 4
      %s20 = int_to_ptr.vmem [resolvable:$true] %s19
      %25 = dma.hbm_to_vmem [thread:$0]  %s2, 2560, %s20, [#allocation3], 512, 512, 32
    $region13: #{decoder_forward.1} parent=1 // pred_fallthru
      _
    // Predicated region
    $region14: #{decoder_forward.1} parent=1 // pred_check
      _
    $region15: #{decoder_forward.1} parent=1 // pred_check_branch
      %27 = sbr.rel (0) target = $region17
    $region16: #{decoder_forward.1} parent=1 // pred_region
      _
    $region17: #{decoder_forward.1} parent=1 // pred_fallthru
      _
    // Predicated region
    $region18: #{decoder_forward.1} parent=1 // pred_check
      _
    $region19: #{decoder_forward.1} parent=1 // pred_check_branch
      %29 = sbr.rel (0) target = $region21
    $region20: #{decoder_forward.1} parent=1 // pred_region
      %30 = dma.done [#allocation3], 2560
    $region21: #{decoder_forward.1} parent=1 // pred_fallthru
      _
    %v31 = vld [vmem:[%s0] sm:$0xff]
    %v32 = vld [vmem:[#allocation2] sm:$0xff]
    %v33 = vld [vmem:[#allocation2 + $0x8] sm:$0xff]
    %v34 = vld [vmem:[#allocation2 + $0x10] sm:$0xff]
    %v35 = vld [vmem:[#allocation2 + $0x18] sm:$0xff]
    %v36 = vld [vmem:[#allocation2 + $0x20] sm:$0xff]
    %v37 = vld [vmem:[#allocation2 + $0x28] sm:$0xff]
    %v38 = vld [vmem:[#allocation2 + $0x30] sm:$0xff]
    %v39 = vld [vmem:[#allocation2 + $0x38] sm:$0xff]
    %v40 = vld [vmem:[#allocation2 + $0x40] sm:$0xff]
    %v41 = vld [vmem:[#allocation2 + $0x48] sm:$0xff]
    %v42 = vld [vmem:[#allocation2 + $0x50] sm:$0xff]
    %v43 = vld [vmem:[#allocation2 + $0x58] sm:$0xff]
    %v44 = vld [vmem:[#allocation2 + $0x60] sm:$0xff]
    %v45 = vld [vmem:[#allocation2 + $0x68] sm:$0xff]
    %v46 = vld [vmem:[#allocation2 + $0x70] sm:$0xff]
    %v47 = vld [vmem:[#allocation2 + $0x78] sm:$0xff]
    %v48 = vld [vmem:[#allocation2 + $0x80] sm:$0xff]
    %v49 = vld [vmem:[#allocation2 + $0x88] sm:$0xff]
    %v50 = vld [vmem:[#allocation2 + $0x90] sm:$0xff]
    %v51 = vld [vmem:[#allocation2 + $0x98] sm:$0xff]
    %v52 = vld [vmem:[%s3] sm:$0xf]
    %v54 = vlaneseq
    %v55 = vshrl.u32 %v54, 7
    %v56 = vsub.s32 0, %v55
    %v57 = vrot.slane %v52, %v56
    %v58 = vlaneseq
    %v59 = vshrl.u32 %v58, 7
    %v60 = vsub.s32 1, %v59
    %v61 = vrot.slane %v52, %v60
    %v62 = vlaneseq
    %v63 = vshrl.u32 %v62, 7
    %v64 = vsub.s32 2, %v63
    %v65 = vrot.slane %v52, %v64
    %v66 = vlaneseq
    %v67 = vshrl.u32 %v66, 7
    %v68 = vsub.s32 3, %v67
    %v69 = vrot.slane %v52, %v68
    %vm74 = vcmask 326656
    %v76 = vsel %vm74, %v31, 0
    %78 = vmatprep.subr.mxu0 %v33
    %79 = vmatpush1.msra.mxu0 %v32
    %80 = vmatprep.subr.mxu0 %v37
    %81 = vmatpush1.msra.mxu0 %v36
    %82 = vmatprep.subr.mxu0 %v41
    %83 = vmatpush1.msra.mxu0 %v40
    %84 = vmatprep.subr.mxu0 %v45
    %85 = vmatpush1.msra.mxu0 %v44
    %86 = vmatprep.subr.mxu0 %v49
    %87 = vmatpush1.msra.mxu0 %v48
    %88 = vmatprep.subr.mxu0 0.0
    %89 = vmatpush1.msra.mxu0 0.0
    %90 = vmatprep.subr.mxu0 0.0
    %91 = vmatpush1.msra.mxu0 0.0
    %92 = vmatprep.subr.mxu0 0.0
    %93 = vmatpush1.msra.mxu0 0.0
    %94 = vmatprep.subr.mxu0 0.0
    %95 = vmatpush1.msra.mxu0 0.0
    %96 = vmatprep.subr.mxu0 0.0
    %97 = vmatpush1.msra.mxu0 0.0
    %98 = vmatprep.subr.mxu0 0.0
    %99 = vmatpush1.msra.mxu0 0.0
    %100 = vmatprep.subr.mxu0 0.0
    %101 = vmatpush1.msra.mxu0 0.0
    %102 = vmatprep.subr.mxu0 0.0
    %103 = vmatpush1.msra.mxu0 0.0
    %104 = vmatprep.subr.mxu0 0.0
    %105 = vmatpush1.msra.mxu0 0.0
    %106 = vmatprep.subr.mxu0 0.0
    %107 = vmatpush1.msra.mxu0 0.0
    %108 = vmatprep.subr.mxu0 0.0
    %109 = vmatpush1.msra.mxu0 0.0
    %110 = vmatprep.subr.mxu0 0.0
    %111 = vmatpush1.msra.mxu0 0.0
    %112 = vmatprep.subr.mxu0 0.0
    %113 = vmatpush1.msra.mxu0 0.0
    %114 = vmatprep.subr.mxu0 0.0
    %115 = vmatpush1.msra.mxu0 0.0
    %116 = vmatprep.subr.mxu0 0.0
    %117 = vmatpush1.msra.mxu0 0.0
    %118 = vmatprep.subr.mxu0 0.0
    %119 = vmatpush1.msra.mxu0 0.0
    %120 = vmatprep.subr.mxu0 0.0
    %121 = vmatpush1.msra.mxu0 0.0
    %122 = vmatprep.subr.mxu0 0.0
    %123 = vmatpush1.msra.mxu0 0.0
    %124 = vmatprep.subr.mxu0 0.0
    %125 = vmatpush1.msra.mxu0 0.0
    %126 = vmatprep.subr.mxu0 0.0
    %127 = vmatpush1.msra.mxu0 0.0
    %128 = vmatprep.subr.mxu0 0.0
    %129 = vmatpush1.msra.mxu0 0.0
    %130 = vmatprep.subr.mxu0 0.0
    %131 = vmatpush1.msra.mxu0 0.0
    %132 = vmatprep.subr.mxu0 0.0
    %133 = vmatpush1.msra.mxu0 0.0
    %134 = vmatprep.subr.mxu0 0.0
    %135 = vmatpush1.msra.mxu0 0.0
    %136 = vmatprep.subr.mxu0 0.0
    %137 = vmatpush1.msra.mxu0 0.0
    %138 = vmatprep.subr.mxu0 0.0
    %139 = vmatpush1.msra.mxu0 0.0
    %140 = vmatprep.subr.mxu0 0.0
    %141 = vmatpush1.msra.mxu0 0.0
    %142 = vmatprep.mubr.f32.mxu0 0.0
    %143 = vmatmul.mubr.f32.gmra.mrb[0].mxu0 %v76
    %v144 = vpop.f32.mrb[0].mxu0
    %v145 = vadd.f32 %v57, %v144
    %v146 = vpop.f32.mrb[0].mxu0
    %v147 = vadd.f32 %v61, %v146
    %148 = vdwg.mxu0
    %149 = vmatprep.subr.mxu0 %v35
    %150 = vmatpush1.msra.mxu0 %v34
    %151 = vmatprep.subr.mxu0 %v39
    %152 = vmatpush1.msra.mxu0 %v38
    %153 = vmatprep.subr.mxu0 %v43
    %154 = vmatpush1.msra.mxu0 %v42
    %155 = vmatprep.subr.mxu0 %v47
    %156 = vmatpush1.msra.mxu0 %v46
    %157 = vmatprep.subr.mxu0 %v51
    %158 = vmatpush1.msra.mxu0 %v50
    %159 = vmatprep.subr.mxu0 0.0
    %160 = vmatpush1.msra.mxu0 0.0
    %161 = vmatprep.subr.mxu0 0.0
    %162 = vmatpush1.msra.mxu0 0.0
    %163 = vmatprep.subr.mxu0 0.0
    %164 = vmatpush1.msra.mxu0 0.0
    %165 = vmatprep.subr.mxu0 0.0
    %166 = vmatpush1.msra.mxu0 0.0
    %167 = vmatprep.subr.mxu0 0.0
    %168 = vmatpush1.msra.mxu0 0.0
    %169 = vmatprep.subr.mxu0 0.0
    %170 = vmatpush1.msra.mxu0 0.0
    %171 = vmatprep.subr.mxu0 0.0
    %172 = vmatpush1.msra.mxu0 0.0
    %173 = vmatprep.subr.mxu0 0.0
    %174 = vmatpush1.msra.mxu0 0.0
    %175 = vmatprep.subr.mxu0 0.0
    %176 = vmatpush1.msra.mxu0 0.0
    %177 = vmatprep.subr.mxu0 0.0
    %178 = vmatpush1.msra.mxu0 0.0
    %179 = vmatprep.subr.mxu0 0.0
    %180 = vmatpush1.msra.mxu0 0.0
    %181 = vmatprep.subr.mxu0 0.0
    %182 = vmatpush1.msra.mxu0 0.0
    %183 = vmatprep.subr.mxu0 0.0
    %184 = vmatpush1.msra.mxu0 0.0
    %185 = vmatprep.subr.mxu0 0.0
    %186 = vmatpush1.msra.mxu0 0.0
    %187 = vmatprep.subr.mxu0 0.0
    %188 = vmatpush1.msra.mxu0 0.0
    %189 = vmatprep.subr.mxu0 0.0
    %190 = vmatpush1.msra.mxu0 0.0
    %191 = vmatprep.subr.mxu0 0.0
    %192 = vmatpush1.msra.mxu0 0.0
    %193 = vmatprep.subr.mxu0 0.0
    %194 = vmatpush1.msra.mxu0 0.0
    %195 = vmatprep.subr.mxu0 0.0
    %196 = vmatpush1.msra.mxu0 0.0
    %197 = vmatprep.subr.mxu0 0.0
    %198 = vmatpush1.msra.mxu0 0.0
    %199 = vmatprep.subr.mxu0 0.0
    %200 = vmatpush1.msra.mxu0 0.0
    %201 = vmatprep.subr.mxu0 0.0
    %202 = vmatpush1.msra.mxu0 0.0
    %203 = vmatprep.subr.mxu0 0.0
    %204 = vmatpush1.msra.mxu0 0.0
    %205 = vmatprep.subr.mxu0 0.0
    %206 = vmatpush1.msra.mxu0 0.0
    %207 = vmatprep.subr.mxu0 0.0
    %208 = vmatpush1.msra.mxu0 0.0
    %209 = vmatprep.subr.mxu0 0.0
    %210 = vmatpush1.msra.mxu0 0.0
    %211 = vmatprep.subr.mxu0 0.0
    %212 = vmatpush1.msra.mxu0 0.0
    %213 = vmatprep.mubr.f32.mxu0 0.0
    %214 = vmatmul.mubr.f32.gmra.mrb[0].mxu0 %v76
    %v215 = vpop.f32.mrb[0].mxu0
    %v216 = vadd.f32 %v65, %v215
    %v217 = vpop.f32.mrb[0].mxu0
    %v218 = vadd.f32 %v69, %v217
    %219 = vdwg.mxu0
    %v220 = vxor.u32 %v145, 2147483648
    %v221 = vmul.f32 %v220, 1.442695
    %v222 = vpow.pop %v221
    %v223 = vadd.f32 %v222, 1.0
    %v224 = vrcp.pop %v223
    %v225 = vmul.f32 1.0, %v224
    %v226 = vxor.u32 %v147, 2147483648
    %v227 = vmul.f32 %v226, 1.442695
    %v228 = vpow.pop %v227
    %v229 = vadd.f32 %v228, 1.0
    %v230 = vrcp.pop %v229
    %v231 = vmul.f32 1.0, %v230
    %v232 = vtanh.pop %v216
    %v233 = vxor.u32 %v218, 2147483648
    %v234 = vmul.f32 %v233, 1.442695
    %v235 = vpow.pop %v234
    %v236 = vadd.f32 %v235, 1.0
    %v237 = vrcp.pop %v236
    %v238 = vmul.f32 1.0, %v237
    %v239 = vld [vmem:[%s1] sm:$0xff]
    %v240 = vmul.f32 %v231, %v239
    %v241 = vmul.f32 %v225, %v232
    %v242 = vadd.f32 %v240, %v241
    %v243 = vtanh.pop %v242
    %v244 = vmul.f32 %v238, %v243
    %245 = vst [vmem:[%s4] sm:$0xff] %v244
    %246 = vst [vmem:[%s4 + $0x8] sm:$0xff] %v242
    // Predicated region
    $region22: #{decoder_forward.1} parent=1 // pred_check
      _
    $region23: #{decoder_forward.1} parent=1 // pred_check_branch
      %248 = sbr.rel (0) target = $region25
    $region24: #{decoder_forward.1} parent=1 // pred_region
      _
    $region25: #{decoder_forward.1} parent=1 // pred_fallthru
      _
    // Predicated region
    $region26: #{decoder_forward.1} parent=1 // pred_check
      _
    $region27: #{decoder_forward.1} parent=1 // pred_check_branch
      %250 = sbr.rel (0) target = $region29
    $region28: #{decoder_forward.1} parent=1 // pred_region
      _
    $region29: #{decoder_forward.1} parent=1 // pred_fallthru
      _
    %251 = vsyncpa [#allocation3], 1

</llo_original>
